<compile_context>
chip_gen: v6e
topology: v6e:2x2x1
jax: 0.10.0
libtpu: 0.0.40
codegen_flags: <defaults>
</compile_context>

<pallas_src>
import math

import jax
import jax.numpy as jnp
from jax.experimental import pallas as pl
from jax.experimental.pallas import tpu as pltpu


# ---------------------------------------------------------------------------
# Buffer construction — same formula as the PyTorch module (f32 master copy).
# ---------------------------------------------------------------------------
def _build_pe_table(max_seq_len: int, embed_dim: int) -> jnp.ndarray:
    position = jnp.arange(max_seq_len, dtype=jnp.float32)[:, None]            # (L, 1)
    div_term = jnp.exp(
        jnp.arange(0, embed_dim, 2, dtype=jnp.float32) * (-math.log(10000.0) / embed_dim)
    )                                                                          # (E/2,)
    pe = jnp.zeros((max_seq_len, embed_dim), dtype=jnp.float32)
    pe = pe.at[:, 0::2].set(jnp.sin(position * div_term))
    pe = pe.at[:, 1::2].set(jnp.cos(position * div_term))
    return pe                                                                  # (L, E)


# ---------------------------------------------------------------------------
# Pallas kernel: elementwise add.  Works for both layouts:
#   3D path: x (ts, B, E) + pe (ts, 1, E)   (stride-0 broadcast over batch)
#   2D path: x (ts, B*E)  + pe (ts, B*E)    (lane-dense, pre-tiled pe)
# ---------------------------------------------------------------------------
def _pe_add_kernel(x_ref, pe_ref, o_ref):
    o_ref[...] = (x_ref[...] + pe_ref[...]).astype(o_ref.dtype)


# ---------------------------------------------------------------------------
# Helpers.
# ---------------------------------------------------------------------------
def _cdiv(a: int, b: int) -> int:
    return -(-a // b)


def _round_up(n: int, m: int) -> int:
    return ((n + m - 1) // m) * m


def _sublane_multiple(dtype) -> int:
    # f32 -> 8 sublanes, bf16/f16 -> 16, int8/fp8 -> 32 (sub-32-bit packs on sublanes).
    return max(8, 32 // jnp.dtype(dtype).itemsize)


def _vmem_capacity_bytes() -> int:
    try:
        return int(pltpu.get_tpu_info().vmem_capacity_bytes)
    except Exception:
        return 64 * 1024 * 1024  # conservative fallback (v7x physical VMEM)


def _choose_seq_tile(S: int, x_row_bytes: int, padded_row_bytes: int, vmem_cap: int) -> int:
    """Pick the seq tile (rows per grid step).

    * target per-block x DMA volume of ~2 MiB (v5e/v6e) / ~6 MiB (v7x, faster
      HBM -> fixed ~0.35us/step overhead is relatively larger),
    * padding-aware VMEM cap (double-buffered x/out/pe tiles),
    * prefer >= 8 grid blocks as long as each block still moves >= 512 KiB.
    """
    target = (6 << 20) if vmem_cap <= (64 << 20) else (2 << 20)
    min_block = 512 << 10
    scoped_limit = min(vmem_cap * 3 // 4, 96 << 20)
    tile_budget = scoped_limit // 2                 # leave half for compiler scratch
    ts_vmem = max(1, tile_budget // (2 * padded_row_bytes))   # 2x = double buffer
    ts_target = max(1, target // max(1, x_row_bytes))
    ts = max(1, min(S, ts_vmem, ts_target))
    ts_eight = max(1, S // 8)
    if ts_eight * x_row_bytes >= min_block:
        ts = min(ts, ts_eight)
    return ts


# ---------------------------------------------------------------------------
# Module: caches pe in the compute dtype; forward = pallas elementwise add.
# ---------------------------------------------------------------------------
class PositionalEncoding:
    def __init__(self, embed_dim: int, max_seq_len: int = 5000, dtype=jnp.float32):
        self.embed_dim = int(embed_dim)
        self.max_seq_len = int(max_seq_len)
        self.dtype = jnp.dtype(dtype)
        self._pe_f32 = _build_pe_table(self.max_seq_len, self.embed_dim)   # (L, E) f32
        self._pe3_cache = {}   # dtype -> (L, 1, E)
        self._pe2_cache = {}   # (batch, dtype) -> (L, B*E)
        self._pe_3d(self.dtype)   # eager cache in the module dtype (hot path does no cast)

    def _pe_3d(self, dtype):
        key = jnp.dtype(dtype)
        if key not in self._pe3_cache:
            self._pe3_cache[key] = self._pe_f32.astype(key)[:, None, :]
        return self._pe3_cache[key]

    def _pe_2d(self, batch, dtype):
        key = (int(batch), jnp.dtype(dtype))
        if key not in self._pe2_cache:
            pe = self._pe_f32.astype(dtype)                                  # (L, E)
            pe = jnp.broadcast_to(pe[:, None, :], (self.max_seq_len, batch, self.embed_dim))
            self._pe2_cache[key] = jnp.reshape(pe, (self.max_seq_len, batch * self.embed_dim))
        return self._pe2_cache[key]

    def __call__(self, x: jnp.ndarray, *, seq_tile: int | None = None, donate_x: bool = False):
        S, B, E = x.shape
        assert E == self.embed_dim, "embed_dim mismatch"
        assert S <= self.max_seq_len, "seq_len exceeds max_seq_len"

        dtype = x.dtype
        itemsize = jnp.dtype(dtype).itemsize
        sub = _sublane_multiple(dtype)
        vmem_cap = _vmem_capacity_bytes()

        # Lane-dense 2D path when E is not a lane multiple but B*E is (small B):
        # unmasked stores + no sublane padding of the x/out/pe VMEM buffers.
        lane_dense_2d = (E % 128 != 0) and ((B * E) % 128 == 0) and (B <= 16)

        if lane_dense_2d:
            BE = B * E
            x_in = x.reshape(S, BE)                      # contiguous view, no data movement
            pe_in = self._pe_2d(B, dtype)                # (L, BE), cached
            x_row_bytes = BE * itemsize
            padded_row_bytes = 3 * _round_up(BE, 128) * itemsize         # x + out + pe
            pe_row_dma = BE * itemsize
        else:
            x_in = x
            pe_in = self._pe_3d(dtype)                   # (L, 1, E), cached
            x_row_bytes = B * E * itemsize
            padded_row_bytes = (2 * _round_up(B, sub) + sub) * _round_up(E, 128) * itemsize
            pe_row_dma = E * itemsize

        ts = seq_tile if seq_tile is not None else _choose_seq_tile(
            S, x_row_bytes, padded_row_bytes, vmem_cap)
        ts = max(1, min(ts, S))
        if lane_dense_2d and ts != S:
            # 2D blocks: second-to-last dim must be a multiple of 8 (or the full dim).
            ts = max(8, (ts // 8) * 8)
            if ts >= S:
                ts = S

        num_blocks = _cdiv(S, ts)
        grid = (num_blocks,)

        # Optional 3-deep pipelining when blocks are small and numerous.
        deep = num_blocks >= 4 and (ts * x_row_bytes) < (1 << 20) and hasattr(pl, "Buffered")
        bs_kwargs = dict(pipeline_mode=pl.Buffered(3)) if deep else {}

        if lane_dense_2d:
            x_spec = pl.BlockSpec((ts, BE), lambda i: (i, 0), **bs_kwargs)
            pe_spec = pl.BlockSpec((ts, BE), lambda i: (i, 0))
            out_spec = pl.BlockSpec((ts, BE), lambda i: (i, 0), **bs_kwargs)
            out_shape = jax.ShapeDtypeStruct((S, BE), dtype)
        else:
            x_spec = pl.BlockSpec((ts, B, E), lambda i: (i, 0, 0), **bs_kwargs)
            pe_spec = pl.BlockSpec((ts, 1, E), lambda i: (i, 0, 0))
            out_spec = pl.BlockSpec((ts, B, E), lambda i: (i, 0, 0), **bs_kwargs)
            out_shape = jax.ShapeDtypeStruct((S, B, E), dtype)

        vmem_limit = min(vmem_cap * 3 // 4, 96 << 20)
        cost = pl.CostEstimate(
            flops=S * B * E,
            transcendentals=0,
            bytes_accessed=2 * S * B * E * itemsize + S * pe_row_dma,
        )

        call_kwargs = dict(
            out_shape=out_shape,
            grid_spec=pltpu.PrefetchScalarGridSpec(
                num_scalar_prefetch=0,
                grid=grid,
                in_specs=[x_spec, pe_spec],
                out_specs=out_spec,
            ),
            compiler_params=pltpu.CompilerParams(
                dimension_semantics=("parallel",),   # seq blocks shard across v7x's 2 TCs
                vmem_limit_bytes=vmem_limit,
            ),
            cost_estimate=cost,
        )
        if donate_x:
            call_kwargs["input_output_aliases"] = {0: 0}

        out = pl.pallas_call(_pe_add_kernel, **call_kwargs)(x_in, pe_in)
        return out.reshape(S, B, E) if lane_dense_2d else out


if __name__ == "__main__":
    embed_dim = 32
    max_seq_len = 64

    posenc = PositionalEncoding(embed_dim, max_seq_len, dtype=jnp.float32)

    # Case 1: demo shapes (seq=8, batch=2, embed=32) -> 3D broadcast path.
    key = jax.random.PRNGKey(0)
    x = jax.random.normal(key, (8, 2, embed_dim), dtype=jnp.float32)
    out = jax.block_until_ready(posenc(x))
    ref = x + posenc._pe_f32[:8][:, None, :]
    assert out.shape == x.shape and out.dtype == x.dtype
    assert jnp.allclose(out, ref, atol=1e-6), "mismatch vs reference (3D path)"

    # Case 2: batch*embed = 128 (lane multiple) -> lane-dense 2D path.
    x2 = jax.random.normal(jax.random.PRNGKey(0), (16, 4, embed_dim), dtype=jnp.float32)
    out2 = jax.block_until_ready(posenc(x2))
    ref2 = x2 + posenc._pe_f32[:16][:, None, :]
    assert out2.shape == x2.shape
    assert jnp.allclose(out2, ref2, atol=1e-6), "mismatch vs reference (2D lane-dense path)"

    print("KERNEL_OK")
</pallas_src>

<mosaic_0001>
module attributes {stable_mosaic.version = 11 : i64} {
  func.func @_pe_add_kernel(%arg0: i32, %arg1: memref<8x2x32xf32, #tpu.memory_space<vmem>>, %arg2: memref<8x1x32xf32, #tpu.memory_space<vmem>>, %arg3: memref<8x2x32xf32, #tpu.memory_space<vmem>>) attributes {dimension_semantics = [#tpu.dimension_semantics<parallel>], iteration_bounds = array<i64: 1>, scalar_prefetch = 0 : i64, scratch_operands = 0 : i64, tpu.core_type = #tpu.core_type<tc>, window_params = [{transform_indices = @transform_0, window_bounds = array<i64: 8, 2, 32>}, {transform_indices = @transform_1, window_bounds = array<i64: 8, 1, 32>}, {transform_indices = @transform_2, window_bounds = array<i64: 8, 2, 32>}]} {
    %c0 = arith.constant 0 : index
    %c0_0 = arith.constant 0 : index
    %c0_1 = arith.constant 0 : index
    %0 = vector.load %arg1[%c0, %c0_0, %c0_1] : memref<8x2x32xf32, #tpu.memory_space<vmem>>, vector<8x2x32xf32>
    %c0_2 = arith.constant 0 : index
    %c0_3 = arith.constant 0 : index
    %c0_4 = arith.constant 0 : index
    %1 = vector.load %arg2[%c0_2, %c0_3, %c0_4] : memref<8x1x32xf32, #tpu.memory_space<vmem>>, vector<8x1x32xf32>
    %2 = vector.broadcast %1 : vector<8x1x32xf32> to vector<8x2x32xf32>
    %3 = arith.addf %0, %2 : vector<8x2x32xf32>
    %c0_5 = arith.constant 0 : index
    %c0_6 = arith.constant 0 : index
    %c0_7 = arith.constant 0 : index
    %4 = vector.load %arg3[%c0_5, %c0_6, %c0_7] : memref<8x2x32xf32, #tpu.memory_space<vmem>>, vector<8x2x32xf32>
    tpu.vector_store %arg3[%c0_5, %c0_6, %c0_7], %3 {strides = array<i32>} : memref<8x2x32xf32, #tpu.memory_space<vmem>>, vector<8x2x32xf32>,
    return
  }
  func.func @transform_0(%arg0: i32) -> (i32, i32, i32) {
    %c0_i32 = arith.constant 0 : i32
    %c0_i32_0 = arith.constant 0 : i32
    %c0_i32_1 = arith.constant 0 : i32
    return %arg0, %c0_i32, %c0_i32_0 : i32, i32, i32
  }
  func.func @transform_1(%arg0: i32) -> (i32, i32, i32) {
    %c0_i32 = arith.constant 0 : i32
    %c0_i32_0 = arith.constant 0 : i32
    %c0_i32_1 = arith.constant 0 : i32
    return %arg0, %c0_i32, %c0_i32_0 : i32, i32, i32
  }
  func.func @transform_2(%arg0: i32) -> (i32, i32, i32) {
    %c0_i32 = arith.constant 0 : i32
    %c0_i32_0 = arith.constant 0 : i32
    %c0_i32_1 = arith.constant 0 : i32
    return %arg0, %c0_i32, %c0_i32_0 : i32, i32, i32
  }
}

</mosaic_0001>

<llo_original>
// kernel: tpu_custom_call.1
$region0: #{tpu_custom_call.1}
  #allocation0 [shape = 'u32[]', space=smem, size = 0x4, offset = 0x4, fixed_abs, tag = 'smem constant byte address 0x4 - core index']
  #allocation1 [shape = 'u32[144,128]{1,0:T(1,128)}', space=vmem, size = 0x12000, scoped, tag = 'internal scratch']
  %s0 = inlined_call_operand.vmem [shape: f32[8,2,32], index: 0, kind: input, shape index: {}]
  %s1 = inlined_call_operand.vmem [shape: f32[64,1,32], index: 1, kind: input, shape index: {}]
  %s2 = inlined_call_operand.hbm [shape: f32[8,2,32], index: 2, kind: output, shape index: {}]
  %s3 = sld [smem:[#allocation0]]
  $region18: #{tpu_custom_call.1} parent=0
    _
  %s5 = ssub.s32 1, %s3
  %s6 = scalar_select 0, %s5, %s3
  $region1: #{tpu_custom_call.1} parent=0
    #allocation2 [shape = 'u8[8192]{0}', space=vmem, size = 0x2000, scoped, tag = 'output window, operand 0, single buffered']
    #allocation3 [shape = 's32[1]{0}', space=sflag, size = 0x4, scoped, tag = 'scoped memory for tpu_custom_call.1']
    %7 = vsyncpa [#allocation3], 0
    // Predicated region
    $region2: #{tpu_custom_call.1} parent=1 // pred_check
      _
    $region3: #{tpu_custom_call.1} parent=1 // pred_check_branch
      %9 = sbr.rel (0) target = $region5
    $region4: #{tpu_custom_call.1} parent=1 // pred_region
      _
    $region5: #{tpu_custom_call.1} parent=1 // pred_fallthru
      _
    // Predicated region
    $region6: #{tpu_custom_call.1} parent=1 // pred_check
      _
    $region7: #{tpu_custom_call.1} parent=1 // pred_check_branch
      %11 = sbr.rel (0) target = $region9
    $region8: #{tpu_custom_call.1} parent=1 // pred_region
      _
    $region9: #{tpu_custom_call.1} parent=1 // pred_fallthru
      _
    %v12 = vld [vmem:[%s0] sm:$0x3]
    %v13 = vld [vmem:[%s0 + $0x2] sm:$0x3]
    %v14 = vld [vmem:[%s0 + $0x4] sm:$0x3]
    %v15 = vld [vmem:[%s0 + $0x6] sm:$0x3]
    %v16 = vld [vmem:[%s0 + $0x8] sm:$0x3]
    %v17 = vld [vmem:[%s0 + $0xa] sm:$0x3]
    %v18 = vld [vmem:[%s0 + $0xc] sm:$0x3]
    %v19 = vld [vmem:[%s0 + $0xe] sm:$0x3]
    %v20 = vld [vmem:[%s1] sm:$0x1]
    %v21 = vld [vmem:[%s1 + $0x1] sm:$0x1]
    %v22 = vld [vmem:[%s1 + $0x2] sm:$0x1]
    %v23 = vld [vmem:[%s1 + $0x3] sm:$0x1]
    %v24 = vld [vmem:[%s1 + $0x4] sm:$0x1]
    %v25 = vld [vmem:[%s1 + $0x5] sm:$0x1]
    %v26 = vld [vmem:[%s1 + $0x6] sm:$0x1]
    %v27 = vld [vmem:[%s1 + $0x7] sm:$0x1]
    %v36 = vlaneseq
    %v37 = vshrl.u32 %v36, 7
    %v38 = vsub.s32 0, %v37
    %v39 = vrot.slane %v20, %v38
    %v40 = vlaneseq
    %v41 = vshrl.u32 %v40, 7
    %v42 = vsub.s32 0, %v41
    %v43 = vrot.slane %v21, %v42
    %v44 = vlaneseq
    %v45 = vshrl.u32 %v44, 7
    %v46 = vsub.s32 0, %v45
    %v47 = vrot.slane %v22, %v46
    %v48 = vlaneseq
    %v49 = vshrl.u32 %v48, 7
    %v50 = vsub.s32 0, %v49
    %v51 = vrot.slane %v23, %v50
    %v52 = vlaneseq
    %v53 = vshrl.u32 %v52, 7
    %v54 = vsub.s32 0, %v53
    %v55 = vrot.slane %v24, %v54
    %v56 = vlaneseq
    %v57 = vshrl.u32 %v56, 7
    %v58 = vsub.s32 0, %v57
    %v59 = vrot.slane %v25, %v58
    %v60 = vlaneseq
    %v61 = vshrl.u32 %v60, 7
    %v62 = vsub.s32 0, %v61
    %v63 = vrot.slane %v26, %v62
    %v64 = vlaneseq
    %v65 = vshrl.u32 %v64, 7
    %v66 = vsub.s32 0, %v65
    %v67 = vrot.slane %v27, %v66
    %v76 = vadd.f32 %v12, %v39
    %v77 = vadd.f32 %v13, %v43
    %v78 = vadd.f32 %v14, %v47
    %v79 = vadd.f32 %v15, %v51
    %v80 = vadd.f32 %v16, %v55
    %v81 = vadd.f32 %v17, %v59
    %v82 = vadd.f32 %v18, %v63
    %v83 = vadd.f32 %v19, %v67
    %vm84 = vcmask 254976
    %85 = vst.msk [vmem:[#allocation2] sm:$0x3] %vm84, %v76
    %86 = vst.msk [vmem:[#allocation2 + $0x2] sm:$0x3] %vm84, %v77
    %87 = vst.msk [vmem:[#allocation2 + $0x4] sm:$0x3] %vm84, %v78
    %88 = vst.msk [vmem:[#allocation2 + $0x6] sm:$0x3] %vm84, %v79
    %89 = vst.msk [vmem:[#allocation2 + $0x8] sm:$0x3] %vm84, %v80
    %90 = vst.msk [vmem:[#allocation2 + $0xa] sm:$0x3] %vm84, %v81
    %91 = vst.msk [vmem:[#allocation2 + $0xc] sm:$0x3] %vm84, %v82
    %92 = vst.msk [vmem:[#allocation2 + $0xe] sm:$0x3] %vm84, %v83
    // Predicated region
    $region10: #{tpu_custom_call.1} parent=1 // pred_check
      _
    $region11: #{tpu_custom_call.1} parent=1 // pred_check_branch
      %94 = sbr.rel (0) target = $region13
    $region12: #{tpu_custom_call.1} parent=1 // pred_region
      %s96 = ssub.s32 256, 256
      %97 = vsyncadd [#allocation3], %s96
      %s98 = sshll.u32 [#allocation2], 4
      %s99 = int_to_ptr.vmem [resolvable:$true] %s98
      %104 = dma.vmem_to_hbm [thread:$0]  %s99, 256, %s2, [#allocation3], 32, 32, 2
    $region13: #{tpu_custom_call.1} parent=1 // pred_fallthru
      _
    // Predicated region
    $region14: #{tpu_custom_call.1} parent=1 // pred_check
      _
    $region15: #{tpu_custom_call.1} parent=1 // pred_check_branch
      %106 = sbr.rel (0) target = $region17
    $region16: #{tpu_custom_call.1} parent=1 // pred_region
      %107 = dma.done [#allocation3], 256
    $region17: #{tpu_custom_call.1} parent=1 // pred_fallthru
      _
    %108 = vsyncpa [#allocation3], 1

</llo_original>
